<compile_context>
chip_gen: v5e
topology: v5e:2x2
jax: 0.10.0
libtpu: 0.0.40
codegen_flags: <defaults>
</compile_context>

<pallas_src>
import functools

import jax
import jax.numpy as jnp
from jax.experimental import pallas as pl
from jax.experimental.pallas import tpu as pltpu


_SQRT_2_OVER_PI = 0.7978845608028654


def _gelu_tanh(x):
    # Matches torch.nn.GELU(approximate='tanh').
    return 0.5 * x * (1.0 + jnp.tanh(_SQRT_2_OVER_PI * (x + 0.044715 * x * x * x)))


def _round_up(x, m):
    return (x + m - 1) // m * m


def _pad_to(a, shape):
    pads = [(0, t - s) for s, t in zip(a.shape, shape)]
    if any(p[1] for p in pads):
        a = jnp.pad(a, pads)
    return a


def _mlp_kernel(x_ref, w1_ref, b1_ref, w2_ref, b2_ref, o_ref, acc_ref):
    j = pl.program_id(1)

    @pl.when(j == 0)
    def _init():
        # Fold the fc2 bias into the accumulator init: saves a (tm, D) VPU add
        # in the finalize epilogue right before the output store.
        acc_ref[...] = jnp.broadcast_to(
            b2_ref[...].astype(jnp.float32), acc_ref.shape)

    # fc1 tile: (tm, D) @ (D, ti) -> (tm, ti), f32 accumulate on the MXU.
    h = jnp.dot(x_ref[...], w1_ref[...],
                preferred_element_type=jnp.float32)
    h = h + b1_ref[...].astype(jnp.float32)
    h = _gelu_tanh(h)                       # f32 GELU; tanh goes to the EUP slot

    # fc2 partial: (tm, ti) @ (ti, D) -> accumulate into the f32 (tm, D) acc.
    acc_ref[...] += jnp.dot(h.astype(w2_ref.dtype), w2_ref[...],
                            preferred_element_type=jnp.float32)

    @pl.when(j == pl.num_programs(1) - 1)
    def _finalize():
        o_ref[...] = acc_ref[...].astype(o_ref.dtype)


def siglip2_mlp(hidden_states, params, *, tm=None, ti=None, compute_dtype=None):
    """Siglip2MLP forward.

    hidden_states: (..., D).  params: PyTorch-style (out, in) weights
    {fc1_w: (I, D), fc1_b: (I,), fc2_w: (D, I), fc2_b: (D,)}.
    compute_dtype: dtype for matmul operands (e.g. jnp.bfloat16 for full MXU
    rate); accumulation is always f32.  None -> use the input dtype.
    """
    orig_shape = hidden_states.shape
    orig_dtype = hidden_states.dtype
    D = orig_shape[-1]
    I = params["fc1_w"].shape[0]

    cdt = jnp.dtype(compute_dtype) if compute_dtype is not None else jnp.dtype(orig_dtype)

    x = hidden_states.reshape(-1, D).astype(cdt)   # flatten batch*seq -> M rows
    M = x.shape[0]

    # Pre-transpose PyTorch (out, in) weights to (in, out): matmuls contract on
    # the last dim, no in-kernel transpose / XLU relayout.
    w1 = params["fc1_w"].T.astype(cdt)              # (D, I)
    b1 = params["fc1_b"].reshape(1, I).astype(cdt)  # (1, I)
    w2 = params["fc2_w"].T.astype(cdt)              # (I, D)
    b2 = params["fc2_b"].reshape(1, D).astype(cdt)  # (1, D)

    # Pad D to a lane-dense multiple of 128 (avoids masked vst.msk stores and
    # idle MXU lanes for misaligned hidden sizes).
    D_pad = _round_up(D, 128)
    I_pad128 = _round_up(I, 128)
    itemsize = cdt.itemsize

    # Weight residency: if both (padded, double-buffered) weights fit a
    # conservative VMEM budget, use ti = I so W1/W2 are streamed from HBM
    # exactly once per forward (index_map constant over the grid).  Otherwise
    # tile the intermediate axis and raise tm to push arithmetic intensity.
    weights_resident = (2 * 2 * D_pad * I_pad128 * itemsize) <= (24 << 20)
    if ti is None:
        ti = I_pad128 if weights_resident else min(512, I_pad128)
    I_pad = _round_up(I, ti)

    if tm is None:
        tm_cap = 512 if weights_resident else 1024
        tm = min(tm_cap, _round_up(M, 8))           # never pad tiny M up to the cap
    M_pad = _round_up(M, tm)

    # Zero-padding is inert: padded b1 columns give gelu(0)=0 hidden columns,
    # padded w2 rows/cols and padded x rows contribute nothing to the sliced
    # output region.
    x = _pad_to(x, (M_pad, D_pad))
    w1 = _pad_to(w1, (D_pad, I_pad))
    b1 = _pad_to(b1, (1, I_pad))
    w2 = _pad_to(w2, (I_pad, D_pad))
    b2 = _pad_to(b2, (1, D_pad))

    grid = (M_pad // tm, I_pad // ti)

    # Explicit scoped-VMEM limit sized from the double-buffered tile footprint
    # (inputs + output) + f32 accumulator scratch + hidden-activation headroom.
    out_itemsize = jnp.dtype(orig_dtype).itemsize
    footprint = (
        2 * (tm * D_pad + D_pad * ti + ti + ti * D_pad + D_pad) * itemsize  # ins (2x buf)
        + 2 * tm * D_pad * out_itemsize                                      # out (2x buf)
        + tm * D_pad * 4                                                     # acc scratch
        + 2 * tm * ti * 4                                                    # hidden act
    )
    vmem_limit = int(min(max(int(footprint * 1.25) + (2 << 20), 16 << 20), 64 << 20))

    out = pl.pallas_call(
        _mlp_kernel,
        out_shape=jax.ShapeDtypeStruct((M_pad, D_pad), orig_dtype),
        grid_spec=pltpu.PrefetchScalarGridSpec(
            num_scalar_prefetch=0,
            grid=grid,
            in_specs=[
                pl.BlockSpec((tm, D_pad), lambda i, j: (i, 0)),   # x tile
                pl.BlockSpec((D_pad, ti), lambda i, j: (0, j)),   # fc1 weight tile
                pl.BlockSpec((1, ti),     lambda i, j: (0, j)),   # fc1 bias tile
                pl.BlockSpec((ti, D_pad), lambda i, j: (j, 0)),   # fc2 weight tile
                pl.BlockSpec((1, D_pad),  lambda i, j: (0, 0)),   # fc2 bias (const)
            ],
            out_specs=pl.BlockSpec((tm, D_pad), lambda i, j: (i, 0)),
            scratch_shapes=[pltpu.VMEM((tm, D_pad), jnp.float32)],
        ),
        compiler_params=pltpu.CompilerParams(
            dimension_semantics=("parallel", "arbitrary"),
            vmem_limit_bytes=vmem_limit),
    )(x, w1, b1, w2, b2)

    return out[:M, :D].reshape(orig_shape)


def _reference(hidden_states, params):
    """Pure-JAX reference mirroring the PyTorch forward (f32)."""
    h = hidden_states @ params["fc1_w"].T + params["fc1_b"]
    h = _gelu_tanh(h)
    return h @ params["fc2_w"].T + params["fc2_b"]


if __name__ == "__main__":
    # Small config consistent with the module: hidden=32, intermediate=128,
    # seq=8, batch=2.
    B, S, D, I = 2, 8, 32, 128

    key = jax.random.PRNGKey(0)
    keys = jax.random.split(key, 5)
    params = {
        "fc1_w": jax.random.normal(keys[0], (I, D), jnp.float32) * 0.1,
        "fc1_b": jax.random.normal(keys[1], (I,), jnp.float32) * 0.1,
        "fc2_w": jax.random.normal(keys[2], (D, I), jnp.float32) * 0.1,
        "fc2_b": jax.random.normal(keys[3], (D,), jnp.float32) * 0.1,
    }
    hidden_states = jax.random.normal(keys[4], (B, S, D), jnp.float32)

    ref = _reference(hidden_states, params)

    # Exact-dtype path (f32 operands, f32 accumulation).
    out = jax.block_until_ready(siglip2_mlp(hidden_states, params))
    assert out.shape == ref.shape, f"shape mismatch {out.shape} vs {ref.shape}"
    assert jnp.allclose(out, ref, atol=1e-4, rtol=1e-4), "f32 path mismatch vs reference"

    # Perf-recommended path: bf16 matmul operands, f32 accumulation.
    out_bf16 = jax.block_until_ready(
        siglip2_mlp(hidden_states, params, compute_dtype=jnp.bfloat16))
    assert out_bf16.shape == ref.shape
    assert jnp.allclose(out_bf16, ref, atol=3e-2, rtol=3e-2), "bf16 path mismatch vs reference"

    print("KERNEL_OK")
</pallas_src>

<mosaic_0001>
module attributes {stable_mosaic.version = 11 : i64} {
  func.func @_mlp_kernel(%arg0: i32, %arg1: i32, %arg2: memref<16x128xf32, #tpu.memory_space<vmem>>, %arg3: memref<128x128xf32, #tpu.memory_space<vmem>>, %arg4: memref<1x128xf32, #tpu.memory_space<vmem>>, %arg5: memref<128x128xf32, #tpu.memory_space<vmem>>, %arg6: memref<1x128xf32, #tpu.memory_space<vmem>>, %arg7: memref<16x128xf32, #tpu.memory_space<vmem>>, %arg8: memref<16x128xf32, #tpu.memory_space<vmem>>) attributes {dimension_semantics = [#tpu.dimension_semantics<parallel>, #tpu.dimension_semantics<arbitrary>], iteration_bounds = array<i64: 1, 1>, scalar_prefetch = 0 : i64, scratch_operands = 1 : i64, tpu.core_type = #tpu.core_type<tc>, window_params = [{transform_indices = @transform_0, window_bounds = array<i64: 16, 128>}, {transform_indices = @transform_1, window_bounds = array<i64: 128, 128>}, {transform_indices = @transform_2, window_bounds = array<i64: 1, 128>}, {transform_indices = @transform_3, window_bounds = array<i64: 128, 128>}, {pipeline_mode = #tpu.pipeline_mode<synchronous>, transform_indices = @transform_4, window_bounds = array<i64: 1, 128>}, {transform_indices = @transform_5, window_bounds = array<i64: 16, 128>}]} {
    %c0_i32 = arith.constant 0 : i32
    %0 = arith.cmpi eq, %arg1, %c0_i32 : i32
    %1 = arith.extui %0 : i1 to i32
    %c0_i32_0 = arith.constant 0 : i32
    %2 = arith.cmpi ne, %1, %c0_i32_0 : i32
    scf.if %2 {
      %c0_19 = arith.constant 0 : index
      %c0_20 = arith.constant 0 : index
      %30 = vector.load %arg6[%c0_19, %c0_20] : memref<1x128xf32, #tpu.memory_space<vmem>>, vector<1x128xf32>
      %31 = vector.shape_cast %30 : vector<1x128xf32> to vector<1x128xf32>
      %32 = vector.broadcast %31 : vector<1x128xf32> to vector<16x128xf32>
      %c0_21 = arith.constant 0 : index
      %c0_22 = arith.constant 0 : index
      %33 = vector.load %arg8[%c0_21, %c0_22] : memref<16x128xf32, #tpu.memory_space<vmem>>, vector<16x128xf32>
      tpu.vector_store %arg8[%c0_21, %c0_22], %32 {strides = array<i32>} : memref<16x128xf32, #tpu.memory_space<vmem>>, vector<16x128xf32>,
    } else {
    }
    %c0 = arith.constant 0 : index
    %c0_1 = arith.constant 0 : index
    %3 = vector.load %arg2[%c0, %c0_1] : memref<16x128xf32, #tpu.memory_space<vmem>>, vector<16x128xf32>
    %c0_2 = arith.constant 0 : index
    %c0_3 = arith.constant 0 : index
    %4 = vector.load %arg3[%c0_2, %c0_3] : memref<128x128xf32, #tpu.memory_space<vmem>>, vector<128x128xf32>
    %cst = arith.constant dense<0.000000e+00> : vector<16x128xf32>
    %5 = tpu.matmul %3, %4, %cst {dimension_numbers = #tpu.dot_dimension_numbers<[1], [0], [0], [1], [0, 0, 1, 1], [], []>} : vector<16x128xf32>, vector<128x128xf32>, vector<16x128xf32> -> vector<16x128xf32>
    %c0_4 = arith.constant 0 : index
    %c0_5 = arith.constant 0 : index
    %6 = vector.load %arg4[%c0_4, %c0_5] : memref<1x128xf32, #tpu.memory_space<vmem>>, vector<1x128xf32>
    %7 = vector.broadcast %6 : vector<1x128xf32> to vector<16x128xf32>
    %8 = arith.addf %5, %7 : vector<16x128xf32>
    %cst_6 = arith.constant 5.000000e-01 : f32
    %9 = vector.broadcast %cst_6 : f32 to vector<16x128xf32>
    %10 = arith.mulf %9, %8 : vector<16x128xf32>
    %cst_7 = arith.constant 4.471500e-02 : f32
    %11 = vector.broadcast %cst_7 : f32 to vector<16x128xf32>
    %12 = arith.mulf %11, %8 : vector<16x128xf32>
    %13 = arith.mulf %12, %8 : vector<16x128xf32>
    %14 = arith.mulf %13, %8 : vector<16x128xf32>
    %15 = arith.addf %8, %14 : vector<16x128xf32>
    %cst_8 = arith.constant 0.797884583 : f32
    %16 = vector.broadcast %cst_8 : f32 to vector<16x128xf32>
    %17 = arith.mulf %16, %15 : vector<16x128xf32>
    %18 = math.tanh %17 : vector<16x128xf32>
    %cst_9 = arith.constant 1.000000e+00 : f32
    %19 = vector.broadcast %cst_9 : f32 to vector<16x128xf32>
    %20 = arith.addf %19, %18 : vector<16x128xf32>
    %21 = arith.mulf %10, %20 : vector<16x128xf32>
    %c0_10 = arith.constant 0 : index
    %c0_11 = arith.constant 0 : index
    %22 = vector.load %arg8[%c0_10, %c0_11] : memref<16x128xf32, #tpu.memory_space<vmem>>, vector<16x128xf32>
    %c0_12 = arith.constant 0 : index
    %c0_13 = arith.constant 0 : index
    %23 = vector.load %arg5[%c0_12, %c0_13] : memref<128x128xf32, #tpu.memory_space<vmem>>, vector<128x128xf32>
    %cst_14 = arith.constant dense<0.000000e+00> : vector<16x128xf32>
    %24 = tpu.matmul %21, %23, %cst_14 {dimension_numbers = #tpu.dot_dimension_numbers<[1], [0], [0], [1], [0, 0, 1, 1], [], []>} : vector<16x128xf32>, vector<128x128xf32>, vector<16x128xf32> -> vector<16x128xf32>
    %25 = arith.addf %22, %24 : vector<16x128xf32>
    %c0_15 = arith.constant 0 : index
    %c0_16 = arith.constant 0 : index
    %26 = vector.load %arg8[%c0_15, %c0_16] : memref<16x128xf32, #tpu.memory_space<vmem>>, vector<16x128xf32>
    tpu.vector_store %arg8[%c0_15, %c0_16], %25 {strides = array<i32>} : memref<16x128xf32, #tpu.memory_space<vmem>>, vector<16x128xf32>,
    %c0_i32_17 = arith.constant 0 : i32
    %27 = arith.cmpi eq, %arg1, %c0_i32_17 : i32
    %28 = arith.extui %27 : i1 to i32
    %c0_i32_18 = arith.constant 0 : i32
    %29 = arith.cmpi ne, %28, %c0_i32_18 : i32
    scf.if %29 {
      %c0_19 = arith.constant 0 : index
      %c0_20 = arith.constant 0 : index
      %30 = vector.load %arg8[%c0_19, %c0_20] : memref<16x128xf32, #tpu.memory_space<vmem>>, vector<16x128xf32>
      %c0_21 = arith.constant 0 : index
      %c0_22 = arith.constant 0 : index
      %31 = vector.load %arg7[%c0_21, %c0_22] : memref<16x128xf32, #tpu.memory_space<vmem>>, vector<16x128xf32>
      tpu.vector_store %arg7[%c0_21, %c0_22], %30 {strides = array<i32>} : memref<16x128xf32, #tpu.memory_space<vmem>>, vector<16x128xf32>,
    } else {
    }
    return
  }
  func.func @transform_0(%arg0: i32, %arg1: i32) -> (i32, i32) {
    %c0_i32 = arith.constant 0 : i32
    %c0_i32_0 = arith.constant 0 : i32
    return %arg0, %c0_i32 : i32, i32
  }
  func.func @transform_1(%arg0: i32, %arg1: i32) -> (i32, i32) {
    %c0_i32 = arith.constant 0 : i32
    %c0_i32_0 = arith.constant 0 : i32
    return %c0_i32, %arg1 : i32, i32
  }
  func.func @transform_2(%arg0: i32, %arg1: i32) -> (i32, i32) {
    %c0_i32 = arith.constant 0 : i32
    %c0_i32_0 = arith.constant 0 : i32
    return %c0_i32, %arg1 : i32, i32
  }
  func.func @transform_3(%arg0: i32, %arg1: i32) -> (i32, i32) {
    %c0_i32 = arith.constant 0 : i32
    %c0_i32_0 = arith.constant 0 : i32
    return %arg1, %c0_i32 : i32, i32
  }
  func.func @transform_4(%arg0: i32, %arg1: i32) -> (i32, i32) {
    %c0_i32 = arith.constant 0 : i32
    %c0_i32_0 = arith.constant 0 : i32
    %c0_i32_1 = arith.constant 0 : i32
    return %c0_i32, %c0_i32_0 : i32, i32
  }
  func.func @transform_5(%arg0: i32, %arg1: i32) -> (i32, i32) {
    %c0_i32 = arith.constant 0 : i32
    %c0_i32_0 = arith.constant 0 : i32
    return %arg0, %c0_i32 : i32, i32
  }
}

</mosaic_0001>

<llo_original>
// kernel: tpu_custom_call.1
$region0: #{tpu_custom_call.1}
  #allocation0 [shape = 'u32[]', space=smem, size = 0x4, offset = 0x4, fixed_abs, tag = 'smem constant byte address 0x4 - core index']
  #allocation1 [shape = 'u32[72,128]{1,0:T(1,128)}', space=vmem, size = 0x9000, scoped, tag = 'internal scratch']
  #allocation2 [shape = 'f32[16,128]{1,0:T(8,128)}', space=vmem, size = 0x2000, scoped, tag = 'scratch operand']
  %s0 = inlined_call_operand.hbm [shape: f32[16,128], index: 0, kind: input, shape index: {}]
  %s1 = inlined_call_operand.hbm [shape: f32[128,128], index: 1, kind: input, shape index: {}]
  %s2 = inlined_call_operand.vmem [shape: f32[1,128], index: 2, kind: input, shape index: {}]
  %s3 = inlined_call_operand.hbm [shape: f32[128,128], index: 3, kind: input, shape index: {}]
  %s4 = inlined_call_operand.vmem [shape: f32[1,128], index: 4, kind: input, shape index: {}]
  %s5 = inlined_call_operand.hbm [shape: f32[16,128], index: 5, kind: output, shape index: {}]
  %s6 = sld [smem:[#allocation0]]
  $region50: #{tpu_custom_call.1} parent=0
    _
  %s8 = ssub.s32 1, %s6
  %s9 = scalar_select 0, %s8, %s6
  $region1: #{tpu_custom_call.1} parent=0
    #allocation3 [shape = 'u8[8192]{0}', space=vmem, size = 0x2000, scoped, tag = 'input window, operand 0, single buffered']
    #allocation4 [shape = 's32[1]{0}', space=sflag, size = 0x4, scoped, tag = 'scoped memory for tpu_custom_call.1']
    #allocation5 [shape = 's32[1]{0}', space=sflag, size = 0x4, scoped, tag = 'scoped memory for tpu_custom_call.1']
    #allocation6 [shape = 'u8[65536]{0}', space=vmem, size = 0x10000, scoped, tag = 'input window, operand 1, single buffered']
    #allocation7 [shape = 's32[1]{0}', space=sflag, size = 0x4, scoped, tag = 'scoped memory for tpu_custom_call.1']
    #allocation8 [shape = 'u8[65536]{0}', space=vmem, size = 0x10000, scoped, tag = 'input window, operand 3, single buffered']
    #allocation9 [shape = 'u8[8192]{0}', space=vmem, size = 0x2000, scoped, tag = 'output window, operand 0, single buffered']
    %10 = vsyncpa [#allocation4], 0
    %11 = vsyncpa [#allocation7], 0
    %12 = vsyncpa [#allocation5], 0
    // Predicated region
    $region2: #{tpu_custom_call.1} parent=1 // pred_check
      _
    $region3: #{tpu_custom_call.1} parent=1 // pred_check_branch
      %14 = sbr.rel (0) target = $region5
    $region4: #{tpu_custom_call.1} parent=1 // pred_region
      %16 = vsyncadd [#allocation4], 0
      %s17 = sshll.u32 %s0, 4
      %s18 = int_to_ptr.hbm [resolvable:$true] %s17
      %s19 = sshll.u32 [#allocation3], 4
      %s20 = int_to_ptr.vmem [resolvable:$true] %s19
      %25 = dma.hbm_to_vmem [thread:$0]  %s18, 256, %s20, [#allocation4], 128, 128, 8
    $region5: #{tpu_custom_call.1} parent=1 // pred_fallthru
      _
    // Predicated region
    $region6: #{tpu_custom_call.1} parent=1 // pred_check
      _
    $region7: #{tpu_custom_call.1} parent=1 // pred_check_branch
      %27 = sbr.rel (0) target = $region9
    $region8: #{tpu_custom_call.1} parent=1 // pred_region
      %29 = vsyncadd [#allocation7], 0
      %s30 = sshll.u32 %s1, 4
      %s31 = int_to_ptr.hbm [resolvable:$true] %s30
      %s32 = sshll.u32 [#allocation6], 4
      %s33 = int_to_ptr.vmem [resolvable:$true] %s32
      %38 = dma.hbm_to_vmem [thread:$0]  %s31, 2048, %s33, [#allocation7], 128, 128, 8
    $region9: #{tpu_custom_call.1} parent=1 // pred_fallthru
      _
    // Predicated region
    $region10: #{tpu_custom_call.1} parent=1 // pred_check
      _
    $region11: #{tpu_custom_call.1} parent=1 // pred_check_branch
      %40 = sbr.rel (0) target = $region13
    $region12: #{tpu_custom_call.1} parent=1 // pred_region
      _
    $region13: #{tpu_custom_call.1} parent=1 // pred_fallthru
      _
    // Predicated region
    $region14: #{tpu_custom_call.1} parent=1 // pred_check
      _
    $region15: #{tpu_custom_call.1} parent=1 // pred_check_branch
      %42 = sbr.rel (0) target = $region17
    $region16: #{tpu_custom_call.1} parent=1 // pred_region
      %44 = vsyncadd [#allocation7], 0
      %s45 = sshll.u32 %s3, 4
      %s46 = int_to_ptr.hbm [resolvable:$true] %s45
      %s47 = sshll.u32 [#allocation8], 4
      %s48 = int_to_ptr.vmem [resolvable:$true] %s47
      %53 = dma.hbm_to_vmem [thread:$0]  %s46, 2048, %s48, [#allocation7], 128, 128, 8
    $region17: #{tpu_custom_call.1} parent=1 // pred_fallthru
      _
    // Predicated region
    $region18: #{tpu_custom_call.1} parent=1 // pred_check
      _
    $region19: #{tpu_custom_call.1} parent=1 // pred_check_branch
      %55 = sbr.rel (0) target = $region21
    $region20: #{tpu_custom_call.1} parent=1 // pred_region
      _
    $region21: #{tpu_custom_call.1} parent=1 // pred_fallthru
      _
    // Predicated region
    $region22: #{tpu_custom_call.1} parent=1 // pred_check
      _
    $region23: #{tpu_custom_call.1} parent=1 // pred_check_branch
      %57 = sbr.rel (0) target = $region25
    $region24: #{tpu_custom_call.1} parent=1 // pred_region
      %59 = dma.done [#allocation4], 256
    $region25: #{tpu_custom_call.1} parent=1 // pred_fallthru
      _
    // Predicated region
    $region26: #{tpu_custom_call.1} parent=1 // pred_check
      _
    $region27: #{tpu_custom_call.1} parent=1 // pred_check_branch
      %61 = sbr.rel (0) target = $region29
    $region28: #{tpu_custom_call.1} parent=1 // pred_region
      %63 = dma.done [#allocation7], 2048
    $region29: #{tpu_custom_call.1} parent=1 // pred_fallthru
      _
    // Predicated region
    $region30: #{tpu_custom_call.1} parent=1 // pred_check
      _
    $region31: #{tpu_custom_call.1} parent=1 // pred_check_branch
      %65 = sbr.rel (0) target = $region33
    $region32: #{tpu_custom_call.1} parent=1 // pred_region
      %67 = dma.done [#allocation7], 2048
    $region33: #{tpu_custom_call.1} parent=1 // pred_fallthru
      _
    %p68 = scmp.eq.s32.totalorder 0, 0
    // Predicated region
    $region34: #{tpu_custom_call.1} parent=1 // pred_check
      %p69 = pneg %p68
    $region35: #{tpu_custom_call.1} parent=1 // pred_check_branch
      %71 = sbr.rel (%p69) target = $region37
    $region36: #{tpu_custom_call.1} parent=1 // pred_region
      %v72 = vld [vmem:[%s4] sm:$0x1]
      %v74 = vperm.slane %v72, 0
      %76 = vst [vmem:[#allocation2] sm:$0xff] %v74
      %77 = vst [vmem:[#allocation2 + $0x8] sm:$0xff] %v74
    $region37: #{tpu_custom_call.1} parent=1 // pred_fallthru
      _
    %v78 = vld [vmem:[#allocation3] sm:$0xff]
    %v79 = vld [vmem:[#allocation3 + $0x8] sm:$0xff]
    %v80 = vld [vmem:[#allocation6] sm:$0xff]
    %v81 = vld [vmem:[#allocation6 + $0x8] sm:$0xff]
    %v82 = vld [vmem:[#allocation6 + $0x10] sm:$0xff]
    %v83 = vld [vmem:[#allocation6 + $0x18] sm:$0xff]
    %v84 = vld [vmem:[#allocation6 + $0x20] sm:$0xff]
    %v85 = vld [vmem:[#allocation6 + $0x28] sm:$0xff]
    %v86 = vld [vmem:[#allocation6 + $0x30] sm:$0xff]
    %v87 = vld [vmem:[#allocation6 + $0x38] sm:$0xff]
    %v88 = vld [vmem:[#allocation6 + $0x40] sm:$0xff]
    %v89 = vld [vmem:[#allocation6 + $0x48] sm:$0xff]
    %v90 = vld [vmem:[#allocation6 + $0x50] sm:$0xff]
    %v91 = vld [vmem:[#allocation6 + $0x58] sm:$0xff]
    %v92 = vld [vmem:[#allocation6 + $0x60] sm:$0xff]
    %v93 = vld [vmem:[#allocation6 + $0x68] sm:$0xff]
    %v94 = vld [vmem:[#allocation6 + $0x70] sm:$0xff]
    %v95 = vld [vmem:[#allocation6 + $0x78] sm:$0xff]
    %v96 = vld [vmem:[%s2] sm:$0x1]
    %v98 = vperm.slane %v96, 0
    %100 = vmatpush.msra.mxu0 %v95
    %101 = vmatpush.msra.mxu0 %v94
    %102 = vmatpush.msra.mxu0 %v93
    %103 = vmatpush.msra.mxu0 %v92
    %104 = vmatpush.msra.mxu0 %v91
    %105 = vmatpush.msra.mxu0 %v90
    %106 = vmatpush.msra.mxu0 %v89
    %107 = vmatpush.msra.mxu0 %v88
    %108 = vmatpush.msra.mxu0 %v87
    %109 = vmatpush.msra.mxu0 %v86
    %110 = vmatpush.msra.mxu0 %v85
    %111 = vmatpush.msra.mxu0 %v84
    %112 = vmatpush.msra.mxu0 %v83
    %113 = vmatpush.msra.mxu0 %v82
    %114 = vmatpush.msra.mxu0 %v81
    %115 = vmatpush.msra.mxu0 %v80
    %116 = vmatmul.f32.gmra.mxu0 %v78
    %v117 = vpop.f32.mrf.mxu0
    %v118 = vadd.f32 %v98, %v117
    %119 = vmatmul.f32.gmra.mxu0 %v79
    %v120 = vpop.f32.mrf.mxu0
    %v121 = vadd.f32 %v98, %v120
    %122 = vdwg.mxu0
    %v123 = vmul.f32 %v118, 0.5
    %v124 = vmul.f32 %v121, 0.5
    %v125 = vmul.f32 %v118, 0.044715
    %v126 = vmul.f32 %v121, 0.044715
    %v127 = vmul.f32 %v125, %v118
    %v128 = vmul.f32 %v126, %v121
    %v129 = vmul.f32 %v127, %v118
    %v130 = vmul.f32 %v128, %v121
    %v131 = vadd.f32 %v118, %v129
    %v132 = vadd.f32 %v121, %v130
    %v133 = vmul.f32 %v131, 0.7978846
    %v134 = vmul.f32 %v132, 0.7978846
    %v135 = vtanh.pop %v133
    %v136 = vtanh.pop %v134
    %v137 = vadd.f32 %v135, 1.0
    %v138 = vadd.f32 %v136, 1.0
    %v139 = vmul.f32 %v123, %v137
    %v140 = vmul.f32 %v124, %v138
    %v141 = vld [vmem:[#allocation2] sm:$0xff]
    %v142 = vld [vmem:[#allocation2 + $0x8] sm:$0xff]
    %v143 = vld [vmem:[#allocation8] sm:$0xff]
    %v144 = vld [vmem:[#allocation8 + $0x8] sm:$0xff]
    %v145 = vld [vmem:[#allocation8 + $0x10] sm:$0xff]
    %v146 = vld [vmem:[#allocation8 + $0x18] sm:$0xff]
    %v147 = vld [vmem:[#allocation8 + $0x20] sm:$0xff]
    %v148 = vld [vmem:[#allocation8 + $0x28] sm:$0xff]
    %v149 = vld [vmem:[#allocation8 + $0x30] sm:$0xff]
    %v150 = vld [vmem:[#allocation8 + $0x38] sm:$0xff]
    %v151 = vld [vmem:[#allocation8 + $0x40] sm:$0xff]
    %v152 = vld [vmem:[#allocation8 + $0x48] sm:$0xff]
    %v153 = vld [vmem:[#allocation8 + $0x50] sm:$0xff]
    %v154 = vld [vmem:[#allocation8 + $0x58] sm:$0xff]
    %v155 = vld [vmem:[#allocation8 + $0x60] sm:$0xff]
    %v156 = vld [vmem:[#allocation8 + $0x68] sm:$0xff]
    %v157 = vld [vmem:[#allocation8 + $0x70] sm:$0xff]
    %v158 = vld [vmem:[#allocation8 + $0x78] sm:$0xff]
    %159 = vmatpush.msra.mxu0 %v158
    %160 = vmatpush.msra.mxu0 %v157
    %161 = vmatpush.msra.mxu0 %v156
    %162 = vmatpush.msra.mxu0 %v155
    %163 = vmatpush.msra.mxu0 %v154
    %164 = vmatpush.msra.mxu0 %v153
    %165 = vmatpush.msra.mxu0 %v152
    %166 = vmatpush.msra.mxu0 %v151
    %167 = vmatpush.msra.mxu0 %v150
    %168 = vmatpush.msra.mxu0 %v149
    %169 = vmatpush.msra.mxu0 %v148
    %170 = vmatpush.msra.mxu0 %v147
    %171 = vmatpush.msra.mxu0 %v146
    %172 = vmatpush.msra.mxu0 %v145
    %173 = vmatpush.msra.mxu0 %v144
    %174 = vmatpush.msra.mxu0 %v143
    %175 = vmatmul.f32.gmra.mxu0 %v139
    %v176 = vpop.f32.mrf.mxu0
    %v177 = vadd.f32 0.0, %v176
    %178 = vmatmul.f32.gmra.mxu0 %v140
    %v179 = vpop.f32.mrf.mxu0
    %v180 = vadd.f32 0.0, %v179
    %181 = vdwg.mxu0
    %v182 = vadd.f32 %v141, %v177
    %v183 = vadd.f32 %v142, %v180
    %184 = vst [vmem:[#allocation2] sm:$0xff] %v182
    %185 = vst [vmem:[#allocation2 + $0x8] sm:$0xff] %v183
    // Predicated region
    $region38: #{tpu_custom_call.1} parent=1 // pred_check
      %p186 = pneg %p68
    $region39: #{tpu_custom_call.1} parent=1 // pred_check_branch
      %188 = sbr.rel (%p186) target = $region41
    $region40: #{tpu_custom_call.1} parent=1 // pred_region
      %v189 = vld [vmem:[#allocation2] sm:$0xff]
      %v190 = vld [vmem:[#allocation2 + $0x8] sm:$0xff]
      %191 = vst [vmem:[#allocation9] sm:$0xff] %v189
      %192 = vst [vmem:[#allocation9 + $0x8] sm:$0xff] %v190
    $region41: #{tpu_custom_call.1} parent=1 // pred_fallthru
      _
    // Predicated region
    $region42: #{tpu_custom_call.1} parent=1 // pred_check
      _
    $region43: #{tpu_custom_call.1} parent=1 // pred_check_branch
      %194 = sbr.rel (0) target = $region45
    $region44: #{tpu_custom_call.1} parent=1 // pred_region
      %196 = vsyncadd [#allocation5], 0
      %s197 = sshll.u32 [#allocation9], 4
      %s198 = int_to_ptr.vmem [resolvable:$true] %s197
      %s199 = sshll.u32 %s5, 4
      %s200 = int_to_ptr.hbm [resolvable:$true] %s199
      %205 = dma.vmem_to_hbm [thread:$0]  %s198, 256, %s200, [#allocation5], 128, 128, 8
    $region45: #{tpu_custom_call.1} parent=1 // pred_fallthru
      _
    // Predicated region
    $region46: #{tpu_custom_call.1} parent=1 // pred_check
      _
    $region47: #{tpu_custom_call.1} parent=1 // pred_check_branch
      %207 = sbr.rel (0) target = $region49
    $region48: #{tpu_custom_call.1} parent=1 // pred_region
      %209 = dma.done [#allocation5], 256
    $region49: #{tpu_custom_call.1} parent=1 // pred_fallthru
      _
    %210 = vsyncpa [#allocation4], 1
    %211 = vsyncpa [#allocation7], 1
    %212 = vsyncpa [#allocation5], 1

</llo_original>
